<compile_context>
chip_gen: v6e
topology: v6e:2x2x1
jax: 0.10.0
libtpu: 0.0.40
codegen_flags: <defaults>
</compile_context>

<pallas_src>
import jax
import jax.numpy as jnp
from jax.experimental import pallas as pl
from jax.experimental.pallas import tpu as pltpu


def bp_mlp_kernel(w1_ref, b1_ref, w2_ref, b2_ref, x_ref, o_ref):
    # SMEM scalars: w1_ref (5,3), b1_ref (5,), w2_ref (5,), b2_ref (1,)
    # VMEM tiles:   x_ref (3, TILE_N), o_ref (1, TILE_N)   -- batch on lanes.
    x0 = x_ref[0:1, :]
    x1 = x_ref[1:2, :]
    x2 = x_ref[2:3, :]

    def hidden(c):
        # Unrolled VPU FMA chain; bias folded into the final add (no (N,5)
        # bias broadcast is ever materialized).
        return jnp.tanh(
            x0 * w1_ref[c, 0] + x1 * w1_ref[c, 1] + x2 * w1_ref[c, 2] + b1_ref[c]
        )

    # Statically unrolled 5-channel hidden layer: 5 independent tanh pushes
    # keep the single EUP FIFO full. Second layer is a scalar-weighted sum.
    z = hidden(0) * w2_ref[0] + b2_ref[0]
    for c in range(1, 5):
        z = z + hidden(c) * w2_ref[c]

    # sigmoid(z) = 1 / (1 + exp(-z)); reciprocal stays on the EUP (approx).
    o_ref[...] = pl.reciprocal(1.0 + jnp.exp(-z), approx=True)


def bp_model_forward(x, w1, b1, w2, b2, *, max_tile_n=16384):
    """x: (N, 3) f32. Weights in PyTorch convention: w1 (5,3), b1 (5,),
    w2 (1,5), b2 (1,). Returns (N, 1) f32."""
    n = x.shape[0]
    # Lane-dense tile: multiple of 128, capped so double-buffered tiles stay
    # tiny (<~200 KiB) — safe even under v7x's 32 MiB scoped VMEM default.
    tile_n = min(max_tile_n, pl.cdiv(n, 128) * 128)
    n_pad = pl.cdiv(n, tile_n) * tile_n

    xt = jnp.transpose(x).astype(jnp.float32)            # (3, N)
    if n_pad != n:
        xt = jnp.pad(xt, ((0, 0), (0, n_pad - n)))       # (3, N_pad)

    smem_spec = pl.BlockSpec(memory_space=pltpu.MemorySpace.SMEM)

    out = pl.pallas_call(
        bp_mlp_kernel,
        out_shape=jax.ShapeDtypeStruct((1, n_pad), jnp.float32),
        grid=(n_pad // tile_n,),
        in_specs=[
            smem_spec,                                    # w1 (5, 3)
            smem_spec,                                    # b1 (5,)
            smem_spec,                                    # w2 (5,)
            smem_spec,                                    # b2 (1,)
            pl.BlockSpec((3, tile_n), lambda i: (0, i)),  # x  (3, N_pad)
        ],
        out_specs=pl.BlockSpec((1, tile_n), lambda i: (0, i)),
        compiler_params=pltpu.CompilerParams(
            dimension_semantics=("parallel",)
        ),
    )(
        w1.astype(jnp.float32),
        b1.reshape(5).astype(jnp.float32),
        w2.reshape(5).astype(jnp.float32),
        b2.reshape(1).astype(jnp.float32),
        xt,
    )
    return jnp.transpose(out[:, :n])                      # (N, 1)


def init_params(key):
    """Deterministic init mimicking PyTorch nn.Linear default (uniform ±1/sqrt(fan_in))."""
    k1, k2, k3, k4 = jax.random.split(key, 4)
    bound1 = 1.0 / jnp.sqrt(3.0)
    bound2 = 1.0 / jnp.sqrt(5.0)
    # PyTorch stores weight as (out, in); keep that convention.
    w1 = jax.random.uniform(k1, (5, 3), jnp.float32, -bound1, bound1)
    b1 = jax.random.uniform(k2, (5,), jnp.float32, -bound1, bound1)
    w2 = jax.random.uniform(k3, (1, 5), jnp.float32, -bound2, bound2)
    b2 = jax.random.uniform(k4, (1,), jnp.float32, -bound2, bound2)
    return w1, b1, w2, b2


if __name__ == "__main__":
    key = jax.random.PRNGKey(0)
    k_x, k_p = jax.random.split(key)

    batch = 8
    x = jax.random.normal(k_x, (batch, 3), jnp.float32)
    w1, b1, w2, b2 = init_params(k_p)

    out = bp_model_forward(x, w1, b1, w2, b2)
    out = jax.block_until_ready(out)

    # Pure-JAX reference (same semantics as the PyTorch forward).
    ref = jax.nn.sigmoid(jnp.tanh(x @ w1.T + b1) @ w2.T + b2)
    assert out.shape == (batch, 1)
    # Tolerance loosened (exact sigmoid -> exp + approx EUP reciprocal).
    assert jnp.allclose(out, ref, atol=2e-3), "mismatch vs reference"

    print("KERNEL_OK")
</pallas_src>

<mosaic_0001>
module attributes {stable_mosaic.version = 11 : i64} {
  func.func @bp_mlp_kernel(%arg0: i32, %arg1: memref<5x3xf32, #tpu.memory_space<smem>>, %arg2: memref<5xf32, #tpu.memory_space<smem>>, %arg3: memref<5xf32, #tpu.memory_space<smem>>, %arg4: memref<1xf32, #tpu.memory_space<smem>>, %arg5: memref<3x128xf32, #tpu.memory_space<vmem>>, %arg6: memref<1x128xf32, #tpu.memory_space<vmem>>) attributes {dimension_semantics = [#tpu.dimension_semantics<parallel>], iteration_bounds = array<i64: 1>, scalar_prefetch = 0 : i64, scratch_operands = 0 : i64, tpu.core_type = #tpu.core_type<tc>, window_params = [{transform_indices = @transform_0, window_bounds = array<i64: 5, 3>}, {transform_indices = @transform_1, window_bounds = array<i64: 5>}, {transform_indices = @transform_2, window_bounds = array<i64: 5>}, {transform_indices = @transform_3, window_bounds = array<i64: 1>}, {transform_indices = @transform_4, window_bounds = array<i64: 3, 128>}, {transform_indices = @transform_5, window_bounds = array<i64: 1, 128>}]} {
    %c0 = arith.constant 0 : index
    %c0_0 = arith.constant 0 : index
    %0 = vector.load %arg5[%c0, %c0_0] : memref<3x128xf32, #tpu.memory_space<vmem>>, vector<1x128xf32>
    %c1 = arith.constant 1 : index
    %c0_1 = arith.constant 0 : index
    %1 = vector.load %arg5[%c1, %c0_1] : memref<3x128xf32, #tpu.memory_space<vmem>>, vector<1x128xf32>
    %c2 = arith.constant 2 : index
    %c0_2 = arith.constant 0 : index
    %2 = vector.load %arg5[%c2, %c0_2] : memref<3x128xf32, #tpu.memory_space<vmem>>, vector<1x128xf32>
    %c0_3 = arith.constant 0 : index
    %c0_4 = arith.constant 0 : index
    %3 = memref.load %arg1[%c0_3, %c0_4] : memref<5x3xf32, #tpu.memory_space<smem>>
    %4 = vector.broadcast %3 : f32 to vector<1x128xf32>
    %5 = arith.mulf %0, %4 : vector<1x128xf32>
    %c0_5 = arith.constant 0 : index
    %c1_6 = arith.constant 1 : index
    %6 = memref.load %arg1[%c0_5, %c1_6] : memref<5x3xf32, #tpu.memory_space<smem>>
    %7 = vector.broadcast %6 : f32 to vector<1x128xf32>
    %8 = arith.mulf %1, %7 : vector<1x128xf32>
    %9 = arith.addf %5, %8 : vector<1x128xf32>
    %c0_7 = arith.constant 0 : index
    %c2_8 = arith.constant 2 : index
    %10 = memref.load %arg1[%c0_7, %c2_8] : memref<5x3xf32, #tpu.memory_space<smem>>
    %11 = vector.broadcast %10 : f32 to vector<1x128xf32>
    %12 = arith.mulf %2, %11 : vector<1x128xf32>
    %13 = arith.addf %9, %12 : vector<1x128xf32>
    %c0_9 = arith.constant 0 : index
    %14 = memref.load %arg2[%c0_9] : memref<5xf32, #tpu.memory_space<smem>>
    %15 = vector.broadcast %14 : f32 to vector<1x128xf32>
    %16 = arith.addf %13, %15 : vector<1x128xf32>
    %17 = math.tanh %16 : vector<1x128xf32>
    %c0_10 = arith.constant 0 : index
    %18 = memref.load %arg3[%c0_10] : memref<5xf32, #tpu.memory_space<smem>>
    %19 = vector.broadcast %18 : f32 to vector<1x128xf32>
    %20 = arith.mulf %17, %19 : vector<1x128xf32>
    %c0_11 = arith.constant 0 : index
    %21 = memref.load %arg4[%c0_11] : memref<1xf32, #tpu.memory_space<smem>>
    %22 = vector.broadcast %21 : f32 to vector<1x128xf32>
    %23 = arith.addf %20, %22 : vector<1x128xf32>
    %c1_12 = arith.constant 1 : index
    %c0_13 = arith.constant 0 : index
    %24 = memref.load %arg1[%c1_12, %c0_13] : memref<5x3xf32, #tpu.memory_space<smem>>
    %25 = vector.broadcast %24 : f32 to vector<1x128xf32>
    %26 = arith.mulf %0, %25 : vector<1x128xf32>
    %c1_14 = arith.constant 1 : index
    %c1_15 = arith.constant 1 : index
    %27 = memref.load %arg1[%c1_14, %c1_15] : memref<5x3xf32, #tpu.memory_space<smem>>
    %28 = vector.broadcast %27 : f32 to vector<1x128xf32>
    %29 = arith.mulf %1, %28 : vector<1x128xf32>
    %30 = arith.addf %26, %29 : vector<1x128xf32>
    %c1_16 = arith.constant 1 : index
    %c2_17 = arith.constant 2 : index
    %31 = memref.load %arg1[%c1_16, %c2_17] : memref<5x3xf32, #tpu.memory_space<smem>>
    %32 = vector.broadcast %31 : f32 to vector<1x128xf32>
    %33 = arith.mulf %2, %32 : vector<1x128xf32>
    %34 = arith.addf %30, %33 : vector<1x128xf32>
    %c1_18 = arith.constant 1 : index
    %35 = memref.load %arg2[%c1_18] : memref<5xf32, #tpu.memory_space<smem>>
    %36 = vector.broadcast %35 : f32 to vector<1x128xf32>
    %37 = arith.addf %34, %36 : vector<1x128xf32>
    %38 = math.tanh %37 : vector<1x128xf32>
    %c1_19 = arith.constant 1 : index
    %39 = memref.load %arg3[%c1_19] : memref<5xf32, #tpu.memory_space<smem>>
    %40 = vector.broadcast %39 : f32 to vector<1x128xf32>
    %41 = arith.mulf %38, %40 : vector<1x128xf32>
    %42 = arith.addf %23, %41 : vector<1x128xf32>
    %c2_20 = arith.constant 2 : index
    %c0_21 = arith.constant 0 : index
    %43 = memref.load %arg1[%c2_20, %c0_21] : memref<5x3xf32, #tpu.memory_space<smem>>
    %44 = vector.broadcast %43 : f32 to vector<1x128xf32>
    %45 = arith.mulf %0, %44 : vector<1x128xf32>
    %c2_22 = arith.constant 2 : index
    %c1_23 = arith.constant 1 : index
    %46 = memref.load %arg1[%c2_22, %c1_23] : memref<5x3xf32, #tpu.memory_space<smem>>
    %47 = vector.broadcast %46 : f32 to vector<1x128xf32>
    %48 = arith.mulf %1, %47 : vector<1x128xf32>
    %49 = arith.addf %45, %48 : vector<1x128xf32>
    %c2_24 = arith.constant 2 : index
    %c2_25 = arith.constant 2 : index
    %50 = memref.load %arg1[%c2_24, %c2_25] : memref<5x3xf32, #tpu.memory_space<smem>>
    %51 = vector.broadcast %50 : f32 to vector<1x128xf32>
    %52 = arith.mulf %2, %51 : vector<1x128xf32>
    %53 = arith.addf %49, %52 : vector<1x128xf32>
    %c2_26 = arith.constant 2 : index
    %54 = memref.load %arg2[%c2_26] : memref<5xf32, #tpu.memory_space<smem>>
    %55 = vector.broadcast %54 : f32 to vector<1x128xf32>
    %56 = arith.addf %53, %55 : vector<1x128xf32>
    %57 = math.tanh %56 : vector<1x128xf32>
    %c2_27 = arith.constant 2 : index
    %58 = memref.load %arg3[%c2_27] : memref<5xf32, #tpu.memory_space<smem>>
    %59 = vector.broadcast %58 : f32 to vector<1x128xf32>
    %60 = arith.mulf %57, %59 : vector<1x128xf32>
    %61 = arith.addf %42, %60 : vector<1x128xf32>
    %c3 = arith.constant 3 : index
    %c0_28 = arith.constant 0 : index
    %62 = memref.load %arg1[%c3, %c0_28] : memref<5x3xf32, #tpu.memory_space<smem>>
    %63 = vector.broadcast %62 : f32 to vector<1x128xf32>
    %64 = arith.mulf %0, %63 : vector<1x128xf32>
    %c3_29 = arith.constant 3 : index
    %c1_30 = arith.constant 1 : index
    %65 = memref.load %arg1[%c3_29, %c1_30] : memref<5x3xf32, #tpu.memory_space<smem>>
    %66 = vector.broadcast %65 : f32 to vector<1x128xf32>
    %67 = arith.mulf %1, %66 : vector<1x128xf32>
    %68 = arith.addf %64, %67 : vector<1x128xf32>
    %c3_31 = arith.constant 3 : index
    %c2_32 = arith.constant 2 : index
    %69 = memref.load %arg1[%c3_31, %c2_32] : memref<5x3xf32, #tpu.memory_space<smem>>
    %70 = vector.broadcast %69 : f32 to vector<1x128xf32>
    %71 = arith.mulf %2, %70 : vector<1x128xf32>
    %72 = arith.addf %68, %71 : vector<1x128xf32>
    %c3_33 = arith.constant 3 : index
    %73 = memref.load %arg2[%c3_33] : memref<5xf32, #tpu.memory_space<smem>>
    %74 = vector.broadcast %73 : f32 to vector<1x128xf32>
    %75 = arith.addf %72, %74 : vector<1x128xf32>
    %76 = math.tanh %75 : vector<1x128xf32>
    %c3_34 = arith.constant 3 : index
    %77 = memref.load %arg3[%c3_34] : memref<5xf32, #tpu.memory_space<smem>>
    %78 = vector.broadcast %77 : f32 to vector<1x128xf32>
    %79 = arith.mulf %76, %78 : vector<1x128xf32>
    %80 = arith.addf %61, %79 : vector<1x128xf32>
    %c4 = arith.constant 4 : index
    %c0_35 = arith.constant 0 : index
    %81 = memref.load %arg1[%c4, %c0_35] : memref<5x3xf32, #tpu.memory_space<smem>>
    %82 = vector.broadcast %81 : f32 to vector<1x128xf32>
    %83 = arith.mulf %0, %82 : vector<1x128xf32>
    %c4_36 = arith.constant 4 : index
    %c1_37 = arith.constant 1 : index
    %84 = memref.load %arg1[%c4_36, %c1_37] : memref<5x3xf32, #tpu.memory_space<smem>>
    %85 = vector.broadcast %84 : f32 to vector<1x128xf32>
    %86 = arith.mulf %1, %85 : vector<1x128xf32>
    %87 = arith.addf %83, %86 : vector<1x128xf32>
    %c4_38 = arith.constant 4 : index
    %c2_39 = arith.constant 2 : index
    %88 = memref.load %arg1[%c4_38, %c2_39] : memref<5x3xf32, #tpu.memory_space<smem>>
    %89 = vector.broadcast %88 : f32 to vector<1x128xf32>
    %90 = arith.mulf %2, %89 : vector<1x128xf32>
    %91 = arith.addf %87, %90 : vector<1x128xf32>
    %c4_40 = arith.constant 4 : index
    %92 = memref.load %arg2[%c4_40] : memref<5xf32, #tpu.memory_space<smem>>
    %93 = vector.broadcast %92 : f32 to vector<1x128xf32>
    %94 = arith.addf %91, %93 : vector<1x128xf32>
    %95 = math.tanh %94 : vector<1x128xf32>
    %c4_41 = arith.constant 4 : index
    %96 = memref.load %arg3[%c4_41] : memref<5xf32, #tpu.memory_space<smem>>
    %97 = vector.broadcast %96 : f32 to vector<1x128xf32>
    %98 = arith.mulf %95, %97 : vector<1x128xf32>
    %99 = arith.addf %80, %98 : vector<1x128xf32>
    %cst = arith.constant 0.000000e+00 : f32
    %100 = vector.broadcast %cst : f32 to vector<1x128xf32>
    %101 = arith.subf %100, %99 : vector<1x128xf32>
    %102 = math.exp %101 : vector<1x128xf32>
    %cst_42 = arith.constant 1.000000e+00 : f32
    %103 = vector.broadcast %cst_42 : f32 to vector<1x128xf32>
    %104 = arith.addf %103, %102 : vector<1x128xf32>
    %105 = tpu.reciprocal %104 {approx = true} : vector<1x128xf32> -> vector<1x128xf32>
    %c0_43 = arith.constant 0 : index
    %c0_44 = arith.constant 0 : index
    %106 = vector.load %arg6[%c0_43, %c0_44] : memref<1x128xf32, #tpu.memory_space<vmem>>, vector<1x128xf32>
    tpu.vector_store %arg6[%c0_43, %c0_44], %105 {strides = array<i32>} : memref<1x128xf32, #tpu.memory_space<vmem>>, vector<1x128xf32>,
    return
  }
  func.func @transform_0(%arg0: i32) -> (i32, i32) {
    %c0_i32 = arith.constant 0 : i32
    %c0_i32_0 = arith.constant 0 : i32
    %c0_i32_1 = arith.constant 0 : i32
    return %c0_i32, %c0_i32_0 : i32, i32
  }
  func.func @transform_1(%arg0: i32) -> i32 {
    %c0_i32 = arith.constant 0 : i32
    %c0_i32_0 = arith.constant 0 : i32
    return %c0_i32 : i32
  }
  func.func @transform_2(%arg0: i32) -> i32 {
    %c0_i32 = arith.constant 0 : i32
    %c0_i32_0 = arith.constant 0 : i32
    return %c0_i32 : i32
  }
  func.func @transform_3(%arg0: i32) -> i32 {
    %c0_i32 = arith.constant 0 : i32
    %c0_i32_0 = arith.constant 0 : i32
    return %c0_i32 : i32
  }
  func.func @transform_4(%arg0: i32) -> (i32, i32) {
    %c0_i32 = arith.constant 0 : i32
    %c0_i32_0 = arith.constant 0 : i32
    return %c0_i32, %arg0 : i32, i32
  }
  func.func @transform_5(%arg0: i32) -> (i32, i32) {
    %c0_i32 = arith.constant 0 : i32
    %c0_i32_0 = arith.constant 0 : i32
    return %c0_i32, %arg0 : i32, i32
  }
}

</mosaic_0001>

<llo_original>
// kernel: tpu_custom_call.1
$region0: #{tpu_custom_call.1}
  #allocation0 [shape = 'u32[]', space=smem, size = 0x4, offset = 0x4, fixed_abs, tag = 'smem constant byte address 0x4 - core index']
  #allocation1 [shape = 'u32[144,128]{1,0:T(1,128)}', space=vmem, size = 0x12000, scoped, tag = 'internal scratch']
  #allocation2 [shape = 'f32[1]{0:T(128)S(6)}', space=smem, size = 0x200, scoped, tag = 'scoped memory for tpu_custom_call.1']
  %s0 = inlined_call_operand.vmem [shape: f32[5,3], index: 0, kind: input, shape index: {}]
  %s1 = inlined_call_operand.vmem [shape: f32[5], index: 1, kind: input, shape index: {}]
  %s2 = inlined_call_operand.vmem [shape: f32[5], index: 2, kind: input, shape index: {}]
  %s3 = inlined_call_operand.<no memory space> [shape: f32[1], index: 3, kind: input, shape index: {}]
  %s4 = inlined_call_operand.vmem [shape: f32[3,128], index: 4, kind: input, shape index: {}]
  %s5 = inlined_call_operand.hbm [shape: f32[1,128], index: 5, kind: output, shape index: {}]
  %s6 = sld [smem:[#allocation0]]
  $region42: #{tpu_custom_call.1} parent=0
    _
  %s8 = ssub.s32 1, %s6
  %s9 = scalar_select 0, %s8, %s6
  %10 = sst [smem:[#allocation2]] %s3
  $region1: #{tpu_custom_call.1} parent=0
    #allocation3 [shape = 'u8[4096]{0}', space=smem, size = 0x1000, scoped, tag = 'input window, operand 0, single buffered']
    #allocation4 [shape = 's32[1]{0}', space=sflag, size = 0x4, scoped, tag = 'scoped memory for tpu_custom_call.1']
    #allocation5 [shape = 's32[1]{0}', space=sflag, size = 0x4, scoped, tag = 'scoped memory for tpu_custom_call.1']
    #allocation6 [shape = 'u8[512]{0}', space=smem, size = 0x200, scoped, tag = 'input window, operand 1, single buffered']
    #allocation7 [shape = 's32[1]{0}', space=sflag, size = 0x4, scoped, tag = 'scoped memory for tpu_custom_call.1']
    #allocation8 [shape = 'u8[512]{0}', space=smem, size = 0x200, scoped, tag = 'input window, operand 2, single buffered']
    #allocation9 [shape = 'u8[512]{0}', space=vmem, size = 0x400, scoped, tag = 'output window, operand 0, single buffered']
    %11 = vsyncpa [#allocation5], 0
    %12 = vsyncpa [#allocation7], 0
    %13 = vsyncpa [#allocation4], 0
    // Predicated region
    $region2: #{tpu_custom_call.1} parent=1 // pred_check
      _
    $region3: #{tpu_custom_call.1} parent=1 // pred_check_branch
      %15 = sbr.rel (0) target = $region5
    $region4: #{tpu_custom_call.1} parent=1 // pred_region
      %s17 = ssub.s32 128, 128
      %18 = vsyncadd [#allocation5], %s17
      %s20 = sshll.u32 %s0, 4
      %s21 = int_to_ptr.vmem [resolvable:$true] %s20
      %23 = dma.vmem_to_smem %s21, 128, [#allocation3], [#allocation5]
    $region5: #{tpu_custom_call.1} parent=1 // pred_fallthru
      _
    // Predicated region
    $region6: #{tpu_custom_call.1} parent=1 // pred_check
      _
    $region7: #{tpu_custom_call.1} parent=1 // pred_check_branch
      %25 = sbr.rel (0) target = $region9
    $region8: #{tpu_custom_call.1} parent=1 // pred_region
      %s27 = ssub.s32 16, 16
      %28 = vsyncadd [#allocation7], %s27
      %s30 = sshll.u32 %s1, 4
      %s31 = int_to_ptr.vmem [resolvable:$true] %s30
      %33 = dma.vmem_to_smem %s31, 16, [#allocation6], [#allocation7]
    $region9: #{tpu_custom_call.1} parent=1 // pred_fallthru
      _
    // Predicated region
    $region10: #{tpu_custom_call.1} parent=1 // pred_check
      _
    $region11: #{tpu_custom_call.1} parent=1 // pred_check_branch
      %35 = sbr.rel (0) target = $region13
    $region12: #{tpu_custom_call.1} parent=1 // pred_region
      %s37 = ssub.s32 16, 16
      %38 = vsyncadd [#allocation7], %s37
      %s40 = sshll.u32 %s2, 4
      %s41 = int_to_ptr.vmem [resolvable:$true] %s40
      %43 = dma.vmem_to_smem %s41, 16, [#allocation8], [#allocation7]
    $region13: #{tpu_custom_call.1} parent=1 // pred_fallthru
      _
    // Predicated region
    $region14: #{tpu_custom_call.1} parent=1 // pred_check
      _
    $region15: #{tpu_custom_call.1} parent=1 // pred_check_branch
      %45 = sbr.rel (0) target = $region17
    $region16: #{tpu_custom_call.1} parent=1 // pred_region
      _
    $region17: #{tpu_custom_call.1} parent=1 // pred_fallthru
      _
    // Predicated region
    $region18: #{tpu_custom_call.1} parent=1 // pred_check
      _
    $region19: #{tpu_custom_call.1} parent=1 // pred_check_branch
      %47 = sbr.rel (0) target = $region21
    $region20: #{tpu_custom_call.1} parent=1 // pred_region
      _
    $region21: #{tpu_custom_call.1} parent=1 // pred_fallthru
      _
    // Predicated region
    $region22: #{tpu_custom_call.1} parent=1 // pred_check
      _
    $region23: #{tpu_custom_call.1} parent=1 // pred_check_branch
      %49 = sbr.rel (0) target = $region25
    $region24: #{tpu_custom_call.1} parent=1 // pred_region
      %50 = dma.done [#allocation5], 128
    $region25: #{tpu_custom_call.1} parent=1 // pred_fallthru
      _
    // Predicated region
    $region26: #{tpu_custom_call.1} parent=1 // pred_check
      _
    $region27: #{tpu_custom_call.1} parent=1 // pred_check_branch
      %52 = sbr.rel (0) target = $region29
    $region28: #{tpu_custom_call.1} parent=1 // pred_region
      %53 = dma.done [#allocation7], 16
    $region29: #{tpu_custom_call.1} parent=1 // pred_fallthru
      _
    // Predicated region
    $region30: #{tpu_custom_call.1} parent=1 // pred_check
      _
    $region31: #{tpu_custom_call.1} parent=1 // pred_check_branch
      %55 = sbr.rel (0) target = $region33
    $region32: #{tpu_custom_call.1} parent=1 // pred_region
      %56 = dma.done [#allocation7], 16
    $region33: #{tpu_custom_call.1} parent=1 // pred_fallthru
      _
    %57 = sfence
    %v58 = vld [vmem:[%s4] sm:$0x1]
    %v59 = vld [vmem:[%s4 + $0x1] sm:$0x1]
    %v60 = vld [vmem:[%s4 + $0x2] sm:$0x1]
    %s61 = sld [smem:[#allocation3]]
    %v62 = vstv %s61
    %v63 = vmul.f32 %v58, %v62
    %s64 = sld [smem:[#allocation3 + $0x1]]
    %v65 = vstv %s64
    %v66 = vmul.f32 %v59, %v65
    %v67 = vadd.f32 %v63, %v66
    %s68 = sld [smem:[#allocation3 + $0x2]]
    %v69 = vstv %s68
    %v70 = vmul.f32 %v60, %v69
    %v71 = vadd.f32 %v67, %v70
    %s72 = sld [smem:[#allocation6]]
    %v73 = vstv %s72
    %v74 = vadd.f32 %v71, %v73
    %v75 = vtanh.pop %v74
    %s76 = sld [smem:[#allocation8]]
    %v77 = vstv %s76
    %v78 = vmul.f32 %v75, %v77
    %s79 = sld [smem:[#allocation2]]
    %v80 = vstv %s79
    %v81 = vadd.f32 %v78, %v80
    %s82 = sld [smem:[#allocation3 + $0x80]]
    %v83 = vstv %s82
    %v84 = vmul.f32 %v58, %v83
    %s85 = sld [smem:[#allocation3 + $0x81]]
    %v86 = vstv %s85
    %v87 = vmul.f32 %v59, %v86
    %v88 = vadd.f32 %v84, %v87
    %s89 = sld [smem:[#allocation3 + $0x82]]
    %v90 = vstv %s89
    %v91 = vmul.f32 %v60, %v90
    %v92 = vadd.f32 %v88, %v91
    %s93 = sld [smem:[#allocation6 + $0x1]]
    %v94 = vstv %s93
    %v95 = vadd.f32 %v92, %v94
    %v96 = vtanh.pop %v95
    %s97 = sld [smem:[#allocation8 + $0x1]]
    %v98 = vstv %s97
    %v99 = vmul.f32 %v96, %v98
    %v100 = vadd.f32 %v81, %v99
    %s101 = sld [smem:[#allocation3 + $0x100]]
    %v102 = vstv %s101
    %v103 = vmul.f32 %v58, %v102
    %s104 = sld [smem:[#allocation3 + $0x101]]
    %v105 = vstv %s104
    %v106 = vmul.f32 %v59, %v105
    %v107 = vadd.f32 %v103, %v106
    %s108 = sld [smem:[#allocation3 + $0x102]]
    %v109 = vstv %s108
    %v110 = vmul.f32 %v60, %v109
    %v111 = vadd.f32 %v107, %v110
    %s112 = sld [smem:[#allocation6 + $0x2]]
    %v113 = vstv %s112
    %v114 = vadd.f32 %v111, %v113
    %v115 = vtanh.pop %v114
    %s116 = sld [smem:[#allocation8 + $0x2]]
    %v117 = vstv %s116
    %v118 = vmul.f32 %v115, %v117
    %v119 = vadd.f32 %v100, %v118
    %s120 = sld [smem:[#allocation3 + $0x180]]
    %v121 = vstv %s120
    %v122 = vmul.f32 %v58, %v121
    %s123 = sld [smem:[#allocation3 + $0x181]]
    %v124 = vstv %s123
    %v125 = vmul.f32 %v59, %v124
    %v126 = vadd.f32 %v122, %v125
    %s127 = sld [smem:[#allocation3 + $0x182]]
    %v128 = vstv %s127
    %v129 = vmul.f32 %v60, %v128
    %v130 = vadd.f32 %v126, %v129
    %s131 = sld [smem:[#allocation6 + $0x3]]
    %v132 = vstv %s131
    %v133 = vadd.f32 %v130, %v132
    %v134 = vtanh.pop %v133
    %s135 = sld [smem:[#allocation8 + $0x3]]
    %v136 = vstv %s135
    %v137 = vmul.f32 %v134, %v136
    %v138 = vadd.f32 %v119, %v137
    %s139 = sld [smem:[#allocation3 + $0x200]]
    %v140 = vstv %s139
    %v141 = vmul.f32 %v58, %v140
    %s142 = sld [smem:[#allocation3 + $0x201]]
    %v143 = vstv %s142
    %v144 = vmul.f32 %v59, %v143
    %v145 = vadd.f32 %v141, %v144
    %s146 = sld [smem:[#allocation3 + $0x202]]
    %v147 = vstv %s146
    %v148 = vmul.f32 %v60, %v147
    %v149 = vadd.f32 %v145, %v148
    %s150 = sld [smem:[#allocation6 + $0x4]]
    %v151 = vstv %s150
    %v152 = vadd.f32 %v149, %v151
    %v153 = vtanh.pop %v152
    %s154 = sld [smem:[#allocation8 + $0x4]]
    %v155 = vstv %s154
    %v156 = vmul.f32 %v153, %v155
    %v157 = vadd.f32 %v138, %v156
    %v158 = vsub.f32 0.0, %v157
    %v159 = vmul.f32 %v158, 1.442695
    %v160 = vpow.pop %v159
    %v161 = vadd.f32 %v160, 1.0
    %v162 = vrcp.pop %v161
    %163 = vst [vmem:[#allocation9] sm:$0x1] %v162
    // Predicated region
    $region34: #{tpu_custom_call.1} parent=1 // pred_check
      _
    $region35: #{tpu_custom_call.1} parent=1 // pred_check_branch
      %165 = sbr.rel (0) target = $region37
    $region36: #{tpu_custom_call.1} parent=1 // pred_region
      %s167 = ssub.s32 16, 16
      %168 = vsyncadd [#allocation4], %s167
      %s170 = sshll.u32 [#allocation9], 4
      %s171 = int_to_ptr.vmem [resolvable:$true] %s170
      %173 = dma.vmem_to_hbm [thread:$0]  %s171, 16, %s5, [#allocation4]
    $region37: #{tpu_custom_call.1} parent=1 // pred_fallthru
      _
    // Predicated region
    $region38: #{tpu_custom_call.1} parent=1 // pred_check
      _
    $region39: #{tpu_custom_call.1} parent=1 // pred_check_branch
      %175 = sbr.rel (0) target = $region41
    $region40: #{tpu_custom_call.1} parent=1 // pred_region
      %176 = dma.done [#allocation4], 16
    $region41: #{tpu_custom_call.1} parent=1 // pred_fallthru
      _
    %177 = vsyncpa [#allocation4], 1
    %178 = vsyncpa [#allocation5], 1
    %179 = vsyncpa [#allocation7], 1

</llo_original>
